<compile_context>
chip_gen: v7x
topology: tpu7x:2x2x1
jax: 0.10.0
libtpu: 0.0.40
codegen_flags: <defaults>
</compile_context>

<pallas_src>
import jax
import jax.numpy as jnp
from jax import lax
from jax.experimental import pallas as pl
from jax.experimental.pallas import tpu as pltpu


def _first_entry_gate_kernel(x_ref, out_ref):
    """x_ref: (TB, F) float32, out_ref: (TB, E) float32."""
    x = x_ref[...]
    # Row-wise expert index = int(x[:, 0])  (trunc-toward-zero, same as .long()).
    idx = x[:, 0:1].astype(jnp.int32)                                   # (TB, 1)
    # Lane ids 0..E-1 broadcast over the batch tile (2-D iota, TPU-safe).
    e_ids = lax.broadcasted_iota(jnp.int32, out_ref.shape, dimension=1)  # (TB, E)
    out_ref[...] = jnp.where(e_ids == idx, 1.0, 0.0).astype(out_ref.dtype)


def first_entry_gate(x, n_experts, *, block_batch=None):
    """x: (B, F) float32 whose first column holds integer expert ids in [0, n_experts)."""
    B, F = x.shape
    if block_batch is None:
        # 256-row tiles are a good default for larger batches (fills sublanes,
        # keeps VMEM tiny); clamp to B for small examples.
        block_batch = min(B, 256)
    assert B % block_batch == 0, "example uses evenly divisible batch tiles"
    grid = (B // block_batch,)

    return pl.pallas_call(
        _first_entry_gate_kernel,
        out_shape=jax.ShapeDtypeStruct((B, n_experts), jnp.float32),
        grid=grid,
        in_specs=[pl.BlockSpec((block_batch, F), lambda i: (i, 0))],
        out_specs=pl.BlockSpec((block_batch, n_experts), lambda i: (i, 0)),
        compiler_params=pltpu.CompilerParams(
            dimension_semantics=("parallel",),  # megacore split on v7x; no-op on v5e/v6e
        ),
    )(x)


def reference_forward(x, n_experts):
    """Pure-JAX reference of the PyTorch module for correctness checking."""
    return jax.nn.one_hot(x[:, 0].astype(jnp.int32), n_experts, dtype=jnp.float32)


if __name__ == "__main__":
    n_experts = 8
    batch, features = 16, 16

    key = jax.random.PRNGKey(0)
    k_idx, k_rest = jax.random.split(key)
    # First column: valid integer expert ids stored as floats (as the module expects).
    first_col = jax.random.randint(k_idx, (batch, 1), 0, n_experts).astype(jnp.float32)
    rest = jax.random.normal(k_rest, (batch, features - 1), jnp.float32)
    x = jnp.concatenate([first_col, rest], axis=1)

    out = first_entry_gate(x, n_experts, block_batch=8)
    out = jax.block_until_ready(out)

    ref = reference_forward(x, n_experts)
    assert out.shape == (batch, n_experts)
    assert jnp.allclose(out, ref), "mismatch vs reference"

    print("KERNEL_OK")
</pallas_src>

<mosaic_0001>
module attributes {stable_mosaic.version = 11 : i64} {
  func.func @_first_entry_gate_kernel(%arg0: i32, %arg1: memref<8x16xf32, #tpu.memory_space<vmem>>, %arg2: memref<8x8xf32, #tpu.memory_space<vmem>>) attributes {dimension_semantics = [#tpu.dimension_semantics<parallel>], iteration_bounds = array<i64: 2>, scalar_prefetch = 0 : i64, scratch_operands = 0 : i64, tpu.core_type = #tpu.core_type<tc>, window_params = [{transform_indices = @transform_0, window_bounds = array<i64: 8, 16>}, {transform_indices = @transform_1, window_bounds = array<i64: 8, 8>}]} {
    %c0 = arith.constant 0 : index
    %c0_0 = arith.constant 0 : index
    %0 = vector.load %arg1[%c0, %c0_0] : memref<8x16xf32, #tpu.memory_space<vmem>>, vector<8x16xf32>
    %1 = vector.extract_strided_slice %0 {offsets = [0, 0], sizes = [8, 1], strides = [1, 1]} : vector<8x16xf32> to vector<8x1xf32>
    %2 = arith.fptosi %1 : vector<8x1xf32> to vector<8x1xi32>
    %3 = tpu.iota {dimensions = array<i32: 1>} : vector<8x8xi32>
    %4 = vector.broadcast %2 : vector<8x1xi32> to vector<8x8xi32>
    %5 = arith.cmpi eq, %3, %4 : vector<8x8xi32>
    %cst = arith.constant 1.000000e+00 : f32
    %cst_1 = arith.constant 0.000000e+00 : f32
    %6 = vector.broadcast %cst : f32 to vector<8x8xf32>
    %7 = vector.broadcast %cst_1 : f32 to vector<8x8xf32>
    %8 = arith.select %5, %6, %7 : vector<8x8xi1>, vector<8x8xf32>
    %c0_2 = arith.constant 0 : index
    %c0_3 = arith.constant 0 : index
    %9 = vector.load %arg2[%c0_2, %c0_3] : memref<8x8xf32, #tpu.memory_space<vmem>>, vector<8x8xf32>
    tpu.vector_store %arg2[%c0_2, %c0_3], %8 {strides = array<i32>} : memref<8x8xf32, #tpu.memory_space<vmem>>, vector<8x8xf32>,
    return
  }
  func.func @transform_0(%arg0: i32) -> (i32, i32) {
    %c0_i32 = arith.constant 0 : i32
    %c0_i32_0 = arith.constant 0 : i32
    return %arg0, %c0_i32 : i32, i32
  }
  func.func @transform_1(%arg0: i32) -> (i32, i32) {
    %c0_i32 = arith.constant 0 : i32
    %c0_i32_0 = arith.constant 0 : i32
    return %arg0, %c0_i32 : i32, i32
  }
}

</mosaic_0001>

<llo_original>
// kernel: tpu_custom_call.1
$region0: #{tpu_custom_call.1}
  #allocation0 [shape = 'u32[]', space=smem, size = 0x4, offset = 0x4, fixed_abs, tag = 'smem constant byte address 0x4 - core index']
  #allocation1 [shape = 'u32[144,128]{1,0:T(1,128)}', space=vmem, size = 0x12000, scoped, tag = 'internal scratch']
  %s0 = inlined_call_operand.hbm [shape: f32[16,16], index: 0, kind: input, shape index: {}]
  %s1 = inlined_call_operand.vmem [shape: f32[16,8], index: 1, kind: output, shape index: {}]
  %s2 = sld [smem:[#allocation0]]
  $region41: #{tpu_custom_call.1} parent=0
    _
  %s4 = ssub.s32 1, %s2
  %s5 = scalar_select 0, %s4, %s2
  $region1: #{tpu_custom_call.1} parent=0
    #allocation2 [shape = 'u8[8192]{0}', space=vmem, size = 0x2000, scoped, tag = 'input window, operand 0']
    #allocation3 [shape = 's32[2]{0}', space=sflag, size = 0x8, scoped, tag = 'scoped memory for tpu_custom_call.1']
    %6 = vsyncpa [#allocation3], 0
    %s7 = scalar_lea.sflag [#allocation3], 1
    %8 = vsyncpa %s7, 0
    loop: start=0, step=1, limit=4
    $region2: #{tpu_custom_call.1} parent=1 // loop_pre_header
      _
    $region3: #{tpu_custom_call.1} parent=1 // loop_header
      %s10 = sphi 0, %s14
      %p11 = scmp.ge.s32.totalorder %s10, 4
      %s20 = sphi 0, %s22
      %s23 = sphi 0, %s20
      %s24 = sphi 0, %s23
      %s40 = sphi 0, %s24
      %s46 = sphi 0, %s48
      %s49 = sphi 0, %s46
      %s50 = sphi 0, %s49
      %s66 = sphi 0, %s50
    $region4: #{tpu_custom_call.1} parent=1 // loop_header_branch
      %13 = sbr.rel (%p11) target = $region8
    $region5: #{tpu_custom_call.1} parent=1 // loop_body
      %s15 = ssub.s32 %s10, 1
      %s16 = ssub.s32 %s10, 2
      %s17 = sadd.s32 %s10, 1
      %s18 = ssub.s32 %s10, %s17
      %p19 = scmp.eq.s32.totalorder %s18, 0
      %s21 = sadd.s32 %s20, 1
      %s22 = scalar_select %p19, %s20, %s21
      %p25 = pneg %p19
      %p26 = scmp.eq.s32.totalorder %s10, 1
      %p27 = por %p25, %p26
      %p28 = scmp.ne.s32.totalorder %s20, %s23
      %p29 = scmp.eq.s32.totalorder %s10, 0
      %p30 = por %p28, %p29
      %p31 = scmp.ne.s32.totalorder %s20, %s23
      %p32 = scmp.eq.s32.totalorder %s15, 1
      %p33 = por %p31, %p32
      %p34 = scmp.ne.s32.totalorder %s23, %s24
      %p35 = scmp.eq.s32.totalorder %s15, 0
      %p36 = por %p34, %p35
      %p37 = scmp.ne.s32.totalorder %s23, %s24
      %p38 = scmp.eq.s32.totalorder %s16, 1
      %p39 = por %p37, %p38
      %p41 = scmp.ne.s32.totalorder %s24, %s40
      %p42 = scmp.eq.s32.totalorder %s16, 0
      %p43 = por %p41, %p42
      %s44 = ssub.s32 %s10, %s17
      %p45 = scmp.eq.s32.totalorder %s44, 0
      %s47 = sadd.s32 %s46, 1
      %s48 = scalar_select %p45, %s46, %s47
      %p51 = pneg %p45
      %p52 = scmp.eq.s32.totalorder %s10, 1
      %p53 = por %p51, %p52
      %p54 = scmp.ne.s32.totalorder %s46, %s49
      %p55 = scmp.eq.s32.totalorder %s10, 0
      %p56 = por %p54, %p55
      %p57 = scmp.ne.s32.totalorder %s46, %s49
      %p58 = scmp.eq.s32.totalorder %s15, 1
      %p59 = por %p57, %p58
      %p60 = scmp.ne.s32.totalorder %s49, %s50
      %p61 = scmp.eq.s32.totalorder %s15, 0
      %p62 = por %p60, %p61
      %p63 = scmp.ne.s32.totalorder %s49, %s50
      %p64 = scmp.eq.s32.totalorder %s16, 1
      %p65 = por %p63, %p64
      %p67 = scmp.ne.s32.totalorder %s50, %s66
      %p68 = scmp.eq.s32.totalorder %s16, 0
      %p69 = por %p67, %p68
      %p70 = scmp.le.s32.totalorder 1, %s10
      %p71 = scmp.lt.s32.totalorder %s10, 3
      %p72 = pnand %p70, %p71
      %p73 = pneg %p72
      // Predicated region
      $region9: #{tpu_custom_call.1} parent=5 // pred_check
        _
      $region10: #{tpu_custom_call.1} parent=5 // pred_check_branch
        %75 = sbr.rel (%p72) target = $region12
      $region11: #{tpu_custom_call.1} parent=5 // pred_region
        %s76 = ssub.s32 %s10, 1
      $region12: #{tpu_custom_call.1} parent=5 // pred_fallthru
        _
      %p77 = scmp.lt.s32.totalorder %s10, 2
      // Predicated region
      $region13: #{tpu_custom_call.1} parent=5 // pred_check
        %p78 = pneg %p77
      $region14: #{tpu_custom_call.1} parent=5 // pred_check_branch
        %80 = sbr.rel (%p78) target = $region16
      $region15: #{tpu_custom_call.1} parent=5 // pred_region
        // Predicated region
        $region17: #{tpu_custom_call.1} parent=15 // pred_check
          %p81 = pneg %p30
        $region18: #{tpu_custom_call.1} parent=15 // pred_check_branch
          %83 = sbr.rel (%p81) target = $region20
        $region19: #{tpu_custom_call.1} parent=15 // pred_region
          %s84 = sand.u32 %s20, 1
          %s85 = scalar_lea.sflag [#allocation3], %s84
          %s86 = sand.u32 %s20, 1
          %s87 = smul.addr %s86, 8
          %s88 = scalar_lea.vmem [#allocation2], %s87
          %s90 = ssub.s32 128, 128
          %91 = vsyncadd %s85, %s90
          %s92 = smul.addr %s10, 128
          %s93 = scalar_lea.hbm %s0, %s92
          %s95 = sshll.u32 %s88, 4
          %s96 = int_to_ptr.vmem [resolvable:$true] %s95
          %98 = dma.hbm_to_vmem [thread:$0]  %s93, 128, %s96, %s85
        $region20: #{tpu_custom_call.1} parent=15 // pred_fallthru
          _
      $region16: #{tpu_custom_call.1} parent=5 // pred_fallthru
        _
      %p99 = scmp.le.s32.totalorder 1, %s10
      %p100 = scmp.lt.s32.totalorder %s10, 3
      %p101 = pnand %p99, %p100
      %p102 = pneg %p101
      // Predicated region
      $region21: #{tpu_custom_call.1} parent=5 // pred_check
        _
      $region22: #{tpu_custom_call.1} parent=5 // pred_check_branch
        %104 = sbr.rel (%p101) target = $region24
      $region23: #{tpu_custom_call.1} parent=5 // pred_region
        %s105 = ssub.s32 %s10, 1
        %s106 = sand.u32 %s23, 1
        %s107 = scalar_lea.sflag [#allocation3], %s106
        %s108 = sand.u32 %s23, 1
        %s109 = smul.addr %s108, 8
        %s110 = scalar_lea.vmem [#allocation2], %s109
        // Predicated region
        $region25: #{tpu_custom_call.1} parent=23 // pred_check
          %p111 = pneg %p36
        $region26: #{tpu_custom_call.1} parent=23 // pred_check_branch
          %113 = sbr.rel (%p111) target = $region28
        $region27: #{tpu_custom_call.1} parent=23 // pred_region
          %114 = dma.done %s107, 128
        $region28: #{tpu_custom_call.1} parent=23 // pred_fallthru
          _
        %s115 = sand.u32 %s23, 1
        %s116 = scalar_lea.sflag [#allocation3], %s115
        %s117 = sand.u32 %s23, 1
        %s118 = smul.addr %s117, 8
        %s119 = scalar_lea.vmem [#allocation2], %s118
        %p120 = pneg %p36
        %p121 = pneg %p33
        %p122 = pneg %p62
        %p123 = pneg %p59
        %p124 = scmp.lt.s32.totalorder %s15, 1
        %s125 = scalar_select %p124, %s15, 1
        %s126 = smul.addr %s125, 8
        %s127 = scalar_lea.vmem %s1, %s126
        %p128 = scmp.lt.s32.totalorder %s15, 1
        %s129 = scalar_select %p128, %s15, 1
        %s130 = smul.addr %s129, 8
        %s131 = scalar_lea.vmem %s1, %s130
        %v132 = vld [vmem:[%s110] sm:$0xff]
        %v133 = vcvt.f32.s32.to.zero.pseudo %v132
        %v134 = vlaneseq
        %v135 = vand.u32 %v134, 127
        %136 = vset.pattern.permute.xlu0 0
        %137 = vperm.xlu0 %136, %v133
        %v138 = vpop.permute.xlu0 %137
        %vm139 = vcmp.eq.s32.totalorder %v135, %v138
        %v140 = vsel %vm139, 1.0, 0.0
        %vm141 = vcmask 64512
        %142 = vst.msk [vmem:[%s131] sm:$0xff] %vm141, %v140
        %p143 = scmp.lt.s32.totalorder %s15, 1
        %s144 = scalar_select %p143, %s15, 1
        %s145 = smul.addr %s144, 8
        %s146 = scalar_lea.vmem %s1, %s145
        // Predicated region
        $region29: #{tpu_custom_call.1} parent=23 // pred_check
          %p147 = pneg %p59
        $region30: #{tpu_custom_call.1} parent=23 // pred_check_branch
          %149 = sbr.rel (%p147) target = $region32
        $region31: #{tpu_custom_call.1} parent=23 // pred_region
          _
        $region32: #{tpu_custom_call.1} parent=23 // pred_fallthru
          _
      $region24: #{tpu_custom_call.1} parent=5 // pred_fallthru
        _
      %p150 = scmp.le.s32.totalorder 2, %s10
      // Predicated region
      $region33: #{tpu_custom_call.1} parent=5 // pred_check
        %p151 = pneg %p150
      $region34: #{tpu_custom_call.1} parent=5 // pred_check_branch
        %153 = sbr.rel (%p151) target = $region36
      $region35: #{tpu_custom_call.1} parent=5 // pred_region
        %s154 = ssub.s32 %s10, 2
        // Predicated region
        $region37: #{tpu_custom_call.1} parent=35 // pred_check
          %p155 = pneg %p65
        $region38: #{tpu_custom_call.1} parent=35 // pred_check_branch
          %157 = sbr.rel (%p155) target = $region40
        $region39: #{tpu_custom_call.1} parent=35 // pred_region
          %p158 = scmp.lt.s32.totalorder %s16, 1
          %s159 = scalar_select %p158, %s16, 1
          %s160 = smul.addr %s159, 8
          %s161 = scalar_lea.vmem %s1, %s160
        $region40: #{tpu_custom_call.1} parent=35 // pred_fallthru
          _
      $region36: #{tpu_custom_call.1} parent=5 // pred_fallthru
        _
    $region6: #{tpu_custom_call.1} parent=1 // loop_footer
      %s14 = sadd.s32 1, %s10
    $region7: #{tpu_custom_call.1} parent=1 // loop_footer_branch
      %9 = sbr.rel target = $region3
    $region8: #{tpu_custom_call.1} parent=1 // loop_exit
      _
    %162 = vsyncpa [#allocation3], 1
    %s163 = scalar_lea.sflag [#allocation3], 1
    %164 = vsyncpa %s163, 1

</llo_original>
